<compile_context>
chip_gen: v5e
topology: v5e:2x2
jax: 0.10.0
libtpu: 0.0.40
codegen_flags: <defaults>
</compile_context>

<pallas_src>
import math
import jax
import jax.numpy as jnp
from jax.experimental import pallas as pl
from jax.experimental.pallas import tpu as pltpu


# --------------------------------------------------------------------------
# Kernels
# --------------------------------------------------------------------------
def _project_kernel(x_ref, w1_ref, w2_ref, s_ref):
    """support = (x @ W1) @ W2 for one row-tile of x (runs once per row tile)."""
    h = jnp.dot(x_ref[...], w1_ref[...], preferred_element_type=jnp.float32)
    s = jnp.dot(h, w2_ref[...], preferred_element_type=jnp.float32)
    s_ref[...] = s.astype(s_ref.dtype)


def _make_aggregate_kernel(tk, has_bias, out_is_acc, resident_support):
    """out[i] = sum_k adj[i, k] @ support[k]  (+ bias, once, in finalize).

    tk               : K-chunk size (columns of adj per step), multiple of 128.
    has_bias         : bias ref present (added once in the finalize branch).
    out_is_acc       : accumulate directly into o_ref (f32 output, resident
                       across k because its block index is (i, 0)); otherwise
                       a trailing f32 VMEM scratch is the accumulator.
    resident_support : support ref holds the FULL (n_pad, f_pad) array in VMEM
                       (constant block index -> fetched once); the kernel
                       slices the current K chunk itself.
    """

    def kernel(*refs):
        if has_bias:
            adj_ref, s_ref, b_ref, o_ref = refs[:4]
            rest = refs[4:]
        else:
            adj_ref, s_ref, o_ref = refs[:3]
            b_ref = None
            rest = refs[3:]
        acc_ref = o_ref if out_is_acc else rest[0]

        k = pl.program_id(1)

        if resident_support:
            start = pl.multiple_of(k * tk, 128)
            s_blk = s_ref[pl.ds(start, tk), :]
        else:
            s_blk = s_ref[...]

        partial = jnp.dot(adj_ref[...], s_blk,
                          preferred_element_type=jnp.float32)

        @pl.when(k == 0)
        def _():
            acc_ref[...] = partial           # init by assignment (no zero fill)

        @pl.when(k > 0)
        def _():
            acc_ref[...] += partial

        if has_bias or not out_is_acc:
            @pl.when(k == pl.num_programs(1) - 1)
            def _():
                out = acc_ref[...]
                if has_bias:
                    out = out + b_ref[...].astype(jnp.float32)
                o_ref[...] = out.astype(o_ref.dtype)

    return kernel


# --------------------------------------------------------------------------
# Tiling / padding helpers
# --------------------------------------------------------------------------
def _round_up(x, m):
    return ((x + m - 1) // m) * m


def _pick_tiles(n, tm_target, tk_target):
    """Pick (tm, tk, n_pad); tm | n_pad, tk | n_pad, all multiples of 128.

    Prefers large tiles (per-step pipeline overhead ~0.35us; 512-wide tiles hit
    ~85% of HBM roofline vs ~29% at 128) but accepts at most ~12.5% zero
    padding so awkward N neither collapses tiles to 128 nor doubles adj
    traffic.  Also guarantees >= 2 row blocks when possible so the 'parallel'
    row axis feeds both v7x TensorCores.
    """
    n128 = _round_up(max(n, 1), 128)

    # K tile: streamed dimension of adj / row dimension of support.
    tk = max(128, (min(tk_target, n128) // 128) * 128)
    while tk > 128 and _round_up(n128, tk) > n128 + n128 // 8:
        tk -= 128
    n_pad = _round_up(n128, tk)

    # Row tile: must divide n_pad.
    tm = max(128, (min(tm_target, n_pad) // 128) * 128)
    while tm > 128 and n_pad % tm != 0:
        tm -= 128

    # v7x megacore: make sure the 'parallel' row axis has >= 2 blocks.
    if n_pad // tm < 2:
        t = max(128, ((n_pad // 2) // 128) * 128)
        while t > 128 and n_pad % t != 0:
            t -= 128
        if n_pad // t >= 2:
            tm = t

    return tm, tk, n_pad


def _pad2(a, rows, cols):
    pr, pc = rows - a.shape[0], cols - a.shape[1]
    if pr == 0 and pc == 0:
        return a
    return jnp.pad(a, ((0, pr), (0, pc)))


def _vmem_limit(working_set_bytes):
    """Right-sized scoped-VMEM limit: 1.5x working set + headroom, capped at
    48 MiB so it stays well under the 64 MiB physical VMEM of a v7x TC."""
    return int(min(max(working_set_bytes * 3 // 2 + (4 << 20), 24 << 20),
                   48 << 20))


# Keep the whole support array VMEM-resident in Stage 2 when its (double
# buffered) footprint is at most this many bytes.
_RESIDENT_SUPPORT_BYTES = 16 << 20


# --------------------------------------------------------------------------
# Wrapper
# --------------------------------------------------------------------------
def graph_convolution(x, adj, w1, w2, bias=None, *,
                      tm_target=512, tk_target=1024, use_bf16=False):
    """Pallas GCN forward.  x: (N, in_f), adj: (N, N) -> (N, out_f).

    use_bf16=True streams adj / support as bf16 (f32 MXU accumulation) to
    roughly halve HBM traffic on the dominant aggregation stage; it breaks
    exact f32 parity with the PyTorch reference, so it is off by default.
    """
    n, in_f = x.shape
    mid = w1.shape[1]
    out_f = w2.shape[1]
    out_dtype = x.dtype

    # Lane-dense / tile-aligned padded shapes (zero padding => exact math).
    in_pad = _round_up(in_f, 128)
    mid_pad = _round_up(mid, 128)
    f_pad = _round_up(out_f, 128)
    tm, tk, n_pad = _pick_tiles(n, tm_target, tk_target)

    support_dtype = jnp.bfloat16 if use_bf16 else jnp.float32
    s_size = jnp.dtype(support_dtype).itemsize

    x_p = _pad2(x, n_pad, in_pad)
    adj_p = _pad2(adj, n_pad, n_pad)
    if use_bf16:
        adj_p = adj_p.astype(jnp.bfloat16)
    w1_p = _pad2(w1, in_pad, mid_pad)
    w2_p = _pad2(w2, mid_pad, f_pad)

    adj_size = adj_p.dtype.itemsize
    out_size = jnp.dtype(out_dtype).itemsize

    # ---- Stage 1: hoisted feature projection, support = (x @ W1) @ W2 ----
    ws1 = (2 * tm * in_pad * x_p.dtype.itemsize
           + 2 * in_pad * mid_pad * w1_p.dtype.itemsize
           + 2 * mid_pad * f_pad * w2_p.dtype.itemsize
           + 2 * tm * f_pad * s_size
           + tm * mid_pad * 4)
    support = pl.pallas_call(
        _project_kernel,
        out_shape=jax.ShapeDtypeStruct((n_pad, f_pad), support_dtype),
        grid=(n_pad // tm,),
        in_specs=[
            pl.BlockSpec((tm, in_pad), lambda i: (i, 0)),
            pl.BlockSpec((in_pad, mid_pad), lambda i: (0, 0)),
            pl.BlockSpec((mid_pad, f_pad), lambda i: (0, 0)),
        ],
        out_specs=pl.BlockSpec((tm, f_pad), lambda i: (i, 0)),
        compiler_params=pltpu.CompilerParams(
            dimension_semantics=("parallel",),
            vmem_limit_bytes=_vmem_limit(ws1)),
    )(x_p, w1_p, w2_p)

    # ---- Stage 2: tiled, pipelined aggregation out = adj @ support (+bias) --
    grid = (n_pad // tm, n_pad // tk)
    resident_support = (2 * n_pad * f_pad * s_size) <= _RESIDENT_SUPPORT_BYTES
    out_is_acc = (jnp.dtype(out_dtype) == jnp.float32)
    has_bias = bias is not None

    in_specs = [pl.BlockSpec((tm, tk), lambda i, k: (i, k))]      # adj tile
    if resident_support:
        # Constant block index + full shape: fetched into VMEM exactly once.
        in_specs.append(pl.BlockSpec((n_pad, f_pad), lambda i, k: (0, 0)))
    else:
        in_specs.append(pl.BlockSpec((tk, f_pad), lambda i, k: (k, 0)))
    args = (adj_p, support)

    if has_bias:
        b_p = _pad2(bias, 1, f_pad)
        in_specs.append(pl.BlockSpec((1, f_pad), lambda i, k: (0, 0)))
        args = args + (b_p,)

    kernel = _make_aggregate_kernel(tk, has_bias, out_is_acc, resident_support)
    scratch_shapes = [] if out_is_acc else [pltpu.VMEM((tm, f_pad), jnp.float32)]

    support_reads = 1 if resident_support else (n_pad // tm)
    cost = pl.CostEstimate(
        flops=2 * n_pad * n_pad * f_pad,
        transcendentals=0,
        bytes_accessed=int(adj_p.size * adj_size
                           + support_reads * n_pad * f_pad * s_size
                           + n_pad * f_pad * out_size
                           + (f_pad * 4 if has_bias else 0)),
    )

    ws2 = (2 * tm * tk * adj_size
           + (2 * n_pad * f_pad * s_size if resident_support
              else 2 * tk * f_pad * s_size)
           + 2 * tm * f_pad * out_size
           + (0 if out_is_acc else tm * f_pad * 4)
           + 2 * f_pad * 4)

    out_p = pl.pallas_call(
        kernel,
        out_shape=jax.ShapeDtypeStruct((n_pad, f_pad), out_dtype),
        grid=grid,
        in_specs=in_specs,
        out_specs=pl.BlockSpec((tm, f_pad), lambda i, k: (i, 0)),
        scratch_shapes=scratch_shapes,
        compiler_params=pltpu.CompilerParams(
            dimension_semantics=("parallel", "arbitrary"),
            vmem_limit_bytes=_vmem_limit(ws2)),
        cost_estimate=cost,
    )(*args)

    return out_p[:n, :out_f]


# --------------------------------------------------------------------------
# Parameter init matching GraphConvolution.reset_parameters
# --------------------------------------------------------------------------
def init_gcn_params(key, in_features, out_features, bias=False, dtype=jnp.float32):
    middle_features = max(32, (in_features + out_features) // 16)
    k1, k2, k3 = jax.random.split(key, 3)

    stdv1 = 1.0 / math.sqrt(middle_features)       # weight1.size(1)
    w1 = jax.random.uniform(k1, (in_features, middle_features),
                            minval=-stdv1, maxval=stdv1, dtype=jnp.float32)

    stdv2 = 1.0 / math.sqrt(out_features)          # weight2.size(1)
    w2 = jax.random.uniform(k2, (middle_features, out_features),
                            minval=-stdv2, maxval=stdv2, dtype=jnp.float32)

    b = None
    if bias:
        b = jax.random.uniform(k3, (1, out_features),
                               minval=-stdv2, maxval=stdv2, dtype=jnp.float32)
        b = b.astype(dtype)
    return w1.astype(dtype), w2.astype(dtype), b


# --------------------------------------------------------------------------
# Self-test
# --------------------------------------------------------------------------
if __name__ == "__main__":
    key = jax.random.PRNGKey(0)

    # Case 1: tiny graph, no bias (module default): 8 nodes, 32 -> 32 feats.
    k_x, k_adj, k_p, key = jax.random.split(key, 4)
    n1, in1, out1 = 8, 32, 32
    x1 = jax.random.normal(k_x, (n1, in1), dtype=jnp.float32)
    a1 = jax.random.uniform(k_adj, (n1, n1), dtype=jnp.float32)
    a1 = a1 / jnp.sum(a1, axis=-1, keepdims=True)
    w1a, w2a, _ = init_gcn_params(k_p, in1, out1, bias=False)

    out_a = jax.block_until_ready(graph_convolution(x1, a1, w1a, w2a))
    ref_a = a1 @ ((x1 @ w1a) @ w2a)
    assert out_a.shape == (n1, out1)
    assert jnp.allclose(out_a, ref_a, atol=1e-4, rtol=1e-4)

    # Case 2: larger graph with bias and ragged feature counts; small tile
    # targets force a real (2, 2) grid -> K accumulation, resident-support
    # slicing, direct-into-output f32 accumulation and padding slice-off.
    k_x, k_adj, k_p, key = jax.random.split(key, 4)
    n2, in2, out2 = 256, 48, 40
    x2 = jax.random.normal(k_x, (n2, in2), dtype=jnp.float32)
    a2 = jax.random.uniform(k_adj, (n2, n2), dtype=jnp.float32)
    a2 = a2 / jnp.sum(a2, axis=-1, keepdims=True)
    w1b, w2b, bb = init_gcn_params(k_p, in2, out2, bias=True)
    ref_b = a2 @ ((x2 @ w1b) @ w2b) + bb

    out_b = jax.block_until_ready(
        graph_convolution(x2, a2, w1b, w2b, bias=bb,
                          tm_target=128, tk_target=128))
    assert out_b.shape == (n2, out2)
    assert jnp.allclose(out_b, ref_b, atol=1e-4, rtol=1e-4)

    # Case 3: bf16 adjacency/support streaming path (f32 accumulation).
    out_c = jax.block_until_ready(
        graph_convolution(x2, a2, w1b, w2b, bias=bb, use_bf16=True))
    assert out_c.shape == (n2, out2)
    assert jnp.allclose(out_c, ref_b, atol=2e-2, rtol=2e-2)

    # Case 4: bf16 inputs -> bf16 output (exercises the scratch-accumulator
    # path used for narrow output dtypes).
    x2h, a2h = x2.astype(jnp.bfloat16), a2.astype(jnp.bfloat16)
    w1h, w2h, bh = (w1b.astype(jnp.bfloat16), w2b.astype(jnp.bfloat16),
                    bb.astype(jnp.bfloat16))
    out_d = jax.block_until_ready(
        graph_convolution(x2h, a2h, w1h, w2h, bias=bh))
    ref_d = (a2h.astype(jnp.float32)
             @ ((x2h.astype(jnp.float32) @ w1h.astype(jnp.float32))
                @ w2h.astype(jnp.float32))
             + bh.astype(jnp.float32))
    assert out_d.shape == (n2, out2)
    assert out_d.dtype == jnp.bfloat16
    assert jnp.allclose(out_d.astype(jnp.float32), ref_d, atol=3e-2, rtol=3e-2)

    print("KERNEL_OK")
</pallas_src>

<mosaic_0001>
module attributes {stable_mosaic.version = 11 : i64} {
  func.func @_project_kernel(%arg0: i32, %arg1: memref<128x128xf32, #tpu.memory_space<vmem>>, %arg2: memref<128x128xf32, #tpu.memory_space<vmem>>, %arg3: memref<128x128xf32, #tpu.memory_space<vmem>>, %arg4: memref<128x128xf32, #tpu.memory_space<vmem>>) attributes {dimension_semantics = [#tpu.dimension_semantics<parallel>], iteration_bounds = array<i64: 1>, scalar_prefetch = 0 : i64, scratch_operands = 0 : i64, tpu.core_type = #tpu.core_type<tc>, window_params = [{transform_indices = @transform_0, window_bounds = array<i64: 128, 128>}, {pipeline_mode = #tpu.pipeline_mode<synchronous>, transform_indices = @transform_1, window_bounds = array<i64: 128, 128>}, {pipeline_mode = #tpu.pipeline_mode<synchronous>, transform_indices = @transform_2, window_bounds = array<i64: 128, 128>}, {transform_indices = @transform_3, window_bounds = array<i64: 128, 128>}]} {
    %c0 = arith.constant 0 : index
    %c0_0 = arith.constant 0 : index
    %0 = vector.load %arg1[%c0, %c0_0] : memref<128x128xf32, #tpu.memory_space<vmem>>, vector<128x128xf32>
    %c0_1 = arith.constant 0 : index
    %c0_2 = arith.constant 0 : index
    %1 = vector.load %arg2[%c0_1, %c0_2] : memref<128x128xf32, #tpu.memory_space<vmem>>, vector<128x128xf32>
    %cst = arith.constant dense<0.000000e+00> : vector<128x128xf32>
    %2 = tpu.matmul %0, %1, %cst {dimension_numbers = #tpu.dot_dimension_numbers<[1], [0], [0], [1], [0, 0, 1, 1], [], []>} : vector<128x128xf32>, vector<128x128xf32>, vector<128x128xf32> -> vector<128x128xf32>
    %c0_3 = arith.constant 0 : index
    %c0_4 = arith.constant 0 : index
    %3 = vector.load %arg3[%c0_3, %c0_4] : memref<128x128xf32, #tpu.memory_space<vmem>>, vector<128x128xf32>
    %cst_5 = arith.constant dense<0.000000e+00> : vector<128x128xf32>
    %4 = tpu.matmul %2, %3, %cst_5 {dimension_numbers = #tpu.dot_dimension_numbers<[1], [0], [0], [1], [0, 0, 1, 1], [], []>} : vector<128x128xf32>, vector<128x128xf32>, vector<128x128xf32> -> vector<128x128xf32>
    %c0_6 = arith.constant 0 : index
    %c0_7 = arith.constant 0 : index
    %5 = vector.load %arg4[%c0_6, %c0_7] : memref<128x128xf32, #tpu.memory_space<vmem>>, vector<128x128xf32>
    tpu.vector_store %arg4[%c0_6, %c0_7], %4 {strides = array<i32>} : memref<128x128xf32, #tpu.memory_space<vmem>>, vector<128x128xf32>,
    return
  }
  func.func @transform_0(%arg0: i32) -> (i32, i32) {
    %c0_i32 = arith.constant 0 : i32
    %c0_i32_0 = arith.constant 0 : i32
    return %arg0, %c0_i32 : i32, i32
  }
  func.func @transform_1(%arg0: i32) -> (i32, i32) {
    %c0_i32 = arith.constant 0 : i32
    %c0_i32_0 = arith.constant 0 : i32
    %c0_i32_1 = arith.constant 0 : i32
    return %c0_i32, %c0_i32_0 : i32, i32
  }
  func.func @transform_2(%arg0: i32) -> (i32, i32) {
    %c0_i32 = arith.constant 0 : i32
    %c0_i32_0 = arith.constant 0 : i32
    %c0_i32_1 = arith.constant 0 : i32
    return %c0_i32, %c0_i32_0 : i32, i32
  }
  func.func @transform_3(%arg0: i32) -> (i32, i32) {
    %c0_i32 = arith.constant 0 : i32
    %c0_i32_0 = arith.constant 0 : i32
    return %arg0, %c0_i32 : i32, i32
  }
}

</mosaic_0001>

<llo_original>
// kernel: tpu_custom_call.1
$region0: #{tpu_custom_call.1}
  #allocation0 [shape = 'u32[]', space=smem, size = 0x4, offset = 0x4, fixed_abs, tag = 'smem constant byte address 0x4 - core index']
  #allocation1 [shape = 'u32[72,128]{1,0:T(1,128)}', space=vmem, size = 0x9000, scoped, tag = 'internal scratch']
  %s0 = inlined_call_operand.hbm [shape: f32[128,128], index: 0, kind: input, shape index: {}]
  %s1 = inlined_call_operand.hbm [shape: f32[128,128], index: 1, kind: input, shape index: {}]
  %s2 = inlined_call_operand.hbm [shape: f32[128,128], index: 2, kind: input, shape index: {}]
  %s3 = inlined_call_operand.hbm [shape: f32[128,128], index: 3, kind: output, shape index: {}]
  %s4 = sld [smem:[#allocation0]]
  $region34: #{tpu_custom_call.1} parent=0
    _
  %s6 = ssub.s32 1, %s4
  %s7 = scalar_select 0, %s6, %s4
  $region1: #{tpu_custom_call.1} parent=0
    #allocation2 [shape = 'u8[65536]{0}', space=vmem, size = 0x10000, scoped, tag = 'input window, operand 0, single buffered']
    #allocation3 [shape = 's32[1]{0}', space=sflag, size = 0x4, scoped, tag = 'scoped memory for tpu_custom_call.1']
    #allocation4 [shape = 's32[1]{0}', space=sflag, size = 0x4, scoped, tag = 'scoped memory for tpu_custom_call.1']
    #allocation5 [shape = 'u8[65536]{0}', space=vmem, size = 0x10000, scoped, tag = 'input window, operand 1, single buffered']
    #allocation6 [shape = 's32[1]{0}', space=sflag, size = 0x4, scoped, tag = 'scoped memory for tpu_custom_call.1']
    #allocation7 [shape = 'u8[65536]{0}', space=vmem, size = 0x10000, scoped, tag = 'input window, operand 2, single buffered']
    #allocation8 [shape = 'u8[65536]{0}', space=vmem, size = 0x10000, scoped, tag = 'output window, operand 0, single buffered']
    %8 = vsyncpa [#allocation3], 0
    %9 = vsyncpa [#allocation6], 0
    %10 = vsyncpa [#allocation4], 0
    // Predicated region
    $region2: #{tpu_custom_call.1} parent=1 // pred_check
      _
    $region3: #{tpu_custom_call.1} parent=1 // pred_check_branch
      %12 = sbr.rel (0) target = $region5
    $region4: #{tpu_custom_call.1} parent=1 // pred_region
      %14 = vsyncadd [#allocation3], 0
      %s15 = sshll.u32 %s0, 4
      %s16 = int_to_ptr.hbm [resolvable:$true] %s15
      %s17 = sshll.u32 [#allocation2], 4
      %s18 = int_to_ptr.vmem [resolvable:$true] %s17
      %23 = dma.hbm_to_vmem [thread:$0]  %s16, 2048, %s18, [#allocation3], 128, 128, 8
    $region5: #{tpu_custom_call.1} parent=1 // pred_fallthru
      _
    // Predicated region
    $region6: #{tpu_custom_call.1} parent=1 // pred_check
      _
    $region7: #{tpu_custom_call.1} parent=1 // pred_check_branch
      %25 = sbr.rel (0) target = $region9
    $region8: #{tpu_custom_call.1} parent=1 // pred_region
      %27 = vsyncadd [#allocation6], 0
      %s28 = sshll.u32 %s1, 4
      %s29 = int_to_ptr.hbm [resolvable:$true] %s28
      %s30 = sshll.u32 [#allocation5], 4
      %s31 = int_to_ptr.vmem [resolvable:$true] %s30
      %36 = dma.hbm_to_vmem [thread:$0]  %s29, 2048, %s31, [#allocation6], 128, 128, 8
    $region9: #{tpu_custom_call.1} parent=1 // pred_fallthru
      _
    // Predicated region
    $region10: #{tpu_custom_call.1} parent=1 // pred_check
      _
    $region11: #{tpu_custom_call.1} parent=1 // pred_check_branch
      %38 = sbr.rel (0) target = $region13
    $region12: #{tpu_custom_call.1} parent=1 // pred_region
      %40 = vsyncadd [#allocation6], 0
      %s41 = sshll.u32 %s2, 4
      %s42 = int_to_ptr.hbm [resolvable:$true] %s41
      %s43 = sshll.u32 [#allocation7], 4
      %s44 = int_to_ptr.vmem [resolvable:$true] %s43
      %49 = dma.hbm_to_vmem [thread:$0]  %s42, 2048, %s44, [#allocation6], 128, 128, 8
    $region13: #{tpu_custom_call.1} parent=1 // pred_fallthru
      _
    // Predicated region
    $region14: #{tpu_custom_call.1} parent=1 // pred_check
      _
    $region15: #{tpu_custom_call.1} parent=1 // pred_check_branch
      %51 = sbr.rel (0) target = $region17
    $region16: #{tpu_custom_call.1} parent=1 // pred_region
      %53 = dma.done [#allocation3], 2048
    $region17: #{tpu_custom_call.1} parent=1 // pred_fallthru
      _
    // Predicated region
    $region18: #{tpu_custom_call.1} parent=1 // pred_check
      _
    $region19: #{tpu_custom_call.1} parent=1 // pred_check_branch
      %55 = sbr.rel (0) target = $region21
    $region20: #{tpu_custom_call.1} parent=1 // pred_region
      %57 = dma.done [#allocation6], 2048
    $region21: #{tpu_custom_call.1} parent=1 // pred_fallthru
      _
    // Predicated region
    $region22: #{tpu_custom_call.1} parent=1 // pred_check
      _
    $region23: #{tpu_custom_call.1} parent=1 // pred_check_branch
      %59 = sbr.rel (0) target = $region25
    $region24: #{tpu_custom_call.1} parent=1 // pred_region
      %61 = dma.done [#allocation6], 2048
    $region25: #{tpu_custom_call.1} parent=1 // pred_fallthru
      _
    %v62 = vld [vmem:[#allocation2] sm:$0xff]
    %v63 = vld [vmem:[#allocation2 + $0x8] sm:$0xff]
    %v64 = vld [vmem:[#allocation2 + $0x10] sm:$0xff]
    %v65 = vld [vmem:[#allocation2 + $0x18] sm:$0xff]
    %v66 = vld [vmem:[#allocation2 + $0x20] sm:$0xff]
    %v67 = vld [vmem:[#allocation2 + $0x28] sm:$0xff]
    %v68 = vld [vmem:[#allocation2 + $0x30] sm:$0xff]
    %v69 = vld [vmem:[#allocation2 + $0x38] sm:$0xff]
    %v70 = vld [vmem:[#allocation2 + $0x40] sm:$0xff]
    %v71 = vld [vmem:[#allocation2 + $0x48] sm:$0xff]
    %v72 = vld [vmem:[#allocation2 + $0x50] sm:$0xff]
    %v73 = vld [vmem:[#allocation2 + $0x58] sm:$0xff]
    %v74 = vld [vmem:[#allocation2 + $0x60] sm:$0xff]
    %v75 = vld [vmem:[#allocation2 + $0x68] sm:$0xff]
    %v76 = vld [vmem:[#allocation2 + $0x70] sm:$0xff]
    %v77 = vld [vmem:[#allocation2 + $0x78] sm:$0xff]
    %v78 = vld [vmem:[#allocation5] sm:$0xff]
    %v79 = vld [vmem:[#allocation5 + $0x8] sm:$0xff]
    %v80 = vld [vmem:[#allocation5 + $0x10] sm:$0xff]
    %v81 = vld [vmem:[#allocation5 + $0x18] sm:$0xff]
    %v82 = vld [vmem:[#allocation5 + $0x20] sm:$0xff]
    %v83 = vld [vmem:[#allocation5 + $0x28] sm:$0xff]
    %v84 = vld [vmem:[#allocation5 + $0x30] sm:$0xff]
    %v85 = vld [vmem:[#allocation5 + $0x38] sm:$0xff]
    %v86 = vld [vmem:[#allocation5 + $0x40] sm:$0xff]
    %v87 = vld [vmem:[#allocation5 + $0x48] sm:$0xff]
    %v88 = vld [vmem:[#allocation5 + $0x50] sm:$0xff]
    %v89 = vld [vmem:[#allocation5 + $0x58] sm:$0xff]
    %v90 = vld [vmem:[#allocation5 + $0x60] sm:$0xff]
    %v91 = vld [vmem:[#allocation5 + $0x68] sm:$0xff]
    %v92 = vld [vmem:[#allocation5 + $0x70] sm:$0xff]
    %v93 = vld [vmem:[#allocation5 + $0x78] sm:$0xff]
    %94 = vmatpush.msra.mxu0 %v93
    %95 = vmatpush.msra.mxu0 %v92
    %96 = vmatpush.msra.mxu0 %v91
    %97 = vmatpush.msra.mxu0 %v90
    %98 = vmatpush.msra.mxu0 %v89
    %99 = vmatpush.msra.mxu0 %v88
    %100 = vmatpush.msra.mxu0 %v87
    %101 = vmatpush.msra.mxu0 %v86
    %102 = vmatpush.msra.mxu0 %v85
    %103 = vmatpush.msra.mxu0 %v84
    %104 = vmatpush.msra.mxu0 %v83
    %105 = vmatpush.msra.mxu0 %v82
    %106 = vmatpush.msra.mxu0 %v81
    %107 = vmatpush.msra.mxu0 %v80
    %108 = vmatpush.msra.mxu0 %v79
    %109 = vmatpush.msra.mxu0 %v78
    %110 = vmatmul.f32.gmra.mxu0 %v62
    %v111 = vpop.f32.mrf.mxu0
    %v112 = vadd.f32 0.0, %v111
    %113 = vmatmul.f32.gmra.mxu0 %v63
    %v114 = vpop.f32.mrf.mxu0
    %v115 = vadd.f32 0.0, %v114
    %116 = vmatmul.f32.gmra.mxu0 %v64
    %v117 = vpop.f32.mrf.mxu0
    %v118 = vadd.f32 0.0, %v117
    %119 = vmatmul.f32.gmra.mxu0 %v65
    %v120 = vpop.f32.mrf.mxu0
    %v121 = vadd.f32 0.0, %v120
    %122 = vmatmul.f32.gmra.mxu0 %v66
    %v123 = vpop.f32.mrf.mxu0
    %v124 = vadd.f32 0.0, %v123
    %125 = vmatmul.f32.gmra.mxu0 %v67
    %v126 = vpop.f32.mrf.mxu0
    %v127 = vadd.f32 0.0, %v126
    %128 = vmatmul.f32.gmra.mxu0 %v68
    %v129 = vpop.f32.mrf.mxu0
    %v130 = vadd.f32 0.0, %v129
    %131 = vmatmul.f32.gmra.mxu0 %v69
    %v132 = vpop.f32.mrf.mxu0
    %v133 = vadd.f32 0.0, %v132
    %134 = vmatmul.f32.gmra.mxu0 %v70
    %v135 = vpop.f32.mrf.mxu0
    %v136 = vadd.f32 0.0, %v135
    %137 = vmatmul.f32.gmra.mxu0 %v71
    %v138 = vpop.f32.mrf.mxu0
    %v139 = vadd.f32 0.0, %v138
    %140 = vmatmul.f32.gmra.mxu0 %v72
    %v141 = vpop.f32.mrf.mxu0
    %v142 = vadd.f32 0.0, %v141
    %143 = vmatmul.f32.gmra.mxu0 %v73
    %v144 = vpop.f32.mrf.mxu0
    %v145 = vadd.f32 0.0, %v144
    %146 = vmatmul.f32.gmra.mxu0 %v74
    %v147 = vpop.f32.mrf.mxu0
    %v148 = vadd.f32 0.0, %v147
    %149 = vmatmul.f32.gmra.mxu0 %v75
    %v150 = vpop.f32.mrf.mxu0
    %v151 = vadd.f32 0.0, %v150
    %152 = vmatmul.f32.gmra.mxu0 %v76
    %v153 = vpop.f32.mrf.mxu0
    %v154 = vadd.f32 0.0, %v153
    %155 = vmatmul.f32.gmra.mxu0 %v77
    %v156 = vpop.f32.mrf.mxu0
    %v157 = vadd.f32 0.0, %v156
    %158 = vdwg.mxu0
    %v159 = vld [vmem:[#allocation7] sm:$0xff]
    %v160 = vld [vmem:[#allocation7 + $0x8] sm:$0xff]
    %v161 = vld [vmem:[#allocation7 + $0x10] sm:$0xff]
    %v162 = vld [vmem:[#allocation7 + $0x18] sm:$0xff]
    %v163 = vld [vmem:[#allocation7 + $0x20] sm:$0xff]
    %v164 = vld [vmem:[#allocation7 + $0x28] sm:$0xff]
    %v165 = vld [vmem:[#allocation7 + $0x30] sm:$0xff]
    %v166 = vld [vmem:[#allocation7 + $0x38] sm:$0xff]
    %v167 = vld [vmem:[#allocation7 + $0x40] sm:$0xff]
    %v168 = vld [vmem:[#allocation7 + $0x48] sm:$0xff]
    %v169 = vld [vmem:[#allocation7 + $0x50] sm:$0xff]
    %v170 = vld [vmem:[#allocation7 + $0x58] sm:$0xff]
    %v171 = vld [vmem:[#allocation7 + $0x60] sm:$0xff]
    %v172 = vld [vmem:[#allocation7 + $0x68] sm:$0xff]
    %v173 = vld [vmem:[#allocation7 + $0x70] sm:$0xff]
    %v174 = vld [vmem:[#allocation7 + $0x78] sm:$0xff]
    %175 = vmatpush.msra.mxu0 %v174
    %176 = vmatpush.msra.mxu0 %v173
    %177 = vmatpush.msra.mxu0 %v172
    %178 = vmatpush.msra.mxu0 %v171
    %179 = vmatpush.msra.mxu0 %v170
    %180 = vmatpush.msra.mxu0 %v169
    %181 = vmatpush.msra.mxu0 %v168
    %182 = vmatpush.msra.mxu0 %v167
    %183 = vmatpush.msra.mxu0 %v166
    %184 = vmatpush.msra.mxu0 %v165
    %185 = vmatpush.msra.mxu0 %v164
    %186 = vmatpush.msra.mxu0 %v163
    %187 = vmatpush.msra.mxu0 %v162
    %188 = vmatpush.msra.mxu0 %v161
    %189 = vmatpush.msra.mxu0 %v160
    %190 = vmatpush.msra.mxu0 %v159
    %191 = vmatmul.f32.gmra.mxu0 %v112
    %v192 = vpop.f32.mrf.mxu0
    %v193 = vadd.f32 0.0, %v192
    %194 = vmatmul.f32.gmra.mxu0 %v115
    %v195 = vpop.f32.mrf.mxu0
    %v196 = vadd.f32 0.0, %v195
    %197 = vmatmul.f32.gmra.mxu0 %v118
    %v198 = vpop.f32.mrf.mxu0
    %v199 = vadd.f32 0.0, %v198
    %200 = vmatmul.f32.gmra.mxu0 %v121
    %v201 = vpop.f32.mrf.mxu0
    %v202 = vadd.f32 0.0, %v201
    %203 = vmatmul.f32.gmra.mxu0 %v124
    %v204 = vpop.f32.mrf.mxu0
    %v205 = vadd.f32 0.0, %v204
    %206 = vmatmul.f32.gmra.mxu0 %v127
    %v207 = vpop.f32.mrf.mxu0
    %v208 = vadd.f32 0.0, %v207
    %209 = vmatmul.f32.gmra.mxu0 %v130
    %v210 = vpop.f32.mrf.mxu0
    %v211 = vadd.f32 0.0, %v210
    %212 = vmatmul.f32.gmra.mxu0 %v133
    %v213 = vpop.f32.mrf.mxu0
    %v214 = vadd.f32 0.0, %v213
    %215 = vmatmul.f32.gmra.mxu0 %v136
    %v216 = vpop.f32.mrf.mxu0
    %v217 = vadd.f32 0.0, %v216
    %218 = vmatmul.f32.gmra.mxu0 %v139
    %v219 = vpop.f32.mrf.mxu0
    %v220 = vadd.f32 0.0, %v219
    %221 = vmatmul.f32.gmra.mxu0 %v142
    %v222 = vpop.f32.mrf.mxu0
    %v223 = vadd.f32 0.0, %v222
    %224 = vmatmul.f32.gmra.mxu0 %v145
    %v225 = vpop.f32.mrf.mxu0
    %v226 = vadd.f32 0.0, %v225
    %227 = vmatmul.f32.gmra.mxu0 %v148
    %v228 = vpop.f32.mrf.mxu0
    %v229 = vadd.f32 0.0, %v228
    %230 = vmatmul.f32.gmra.mxu0 %v151
    %v231 = vpop.f32.mrf.mxu0
    %v232 = vadd.f32 0.0, %v231
    %233 = vmatmul.f32.gmra.mxu0 %v154
    %v234 = vpop.f32.mrf.mxu0
    %v235 = vadd.f32 0.0, %v234
    %236 = vmatmul.f32.gmra.mxu0 %v157
    %v237 = vpop.f32.mrf.mxu0
    %v238 = vadd.f32 0.0, %v237
    %239 = vdwg.mxu0
    %240 = vst [vmem:[#allocation8] sm:$0xff] %v193
    %241 = vst [vmem:[#allocation8 + $0x8] sm:$0xff] %v196
    %242 = vst [vmem:[#allocation8 + $0x10] sm:$0xff] %v199
    %243 = vst [vmem:[#allocation8 + $0x18] sm:$0xff] %v202
    %244 = vst [vmem:[#allocation8 + $0x20] sm:$0xff] %v205
    %245 = vst [vmem:[#allocation8 + $0x28] sm:$0xff] %v208
    %246 = vst [vmem:[#allocation8 + $0x30] sm:$0xff] %v211
    %247 = vst [vmem:[#allocation8 + $0x38] sm:$0xff] %v214
    %248 = vst [vmem:[#allocation8 + $0x40] sm:$0xff] %v217
    %249 = vst [vmem:[#allocation8 + $0x48] sm:$0xff] %v220
    %250 = vst [vmem:[#allocation8 + $0x50] sm:$0xff] %v223
    %251 = vst [vmem:[#allocation8 + $0x58] sm:$0xff] %v226
    %252 = vst [vmem:[#allocation8 + $0x60] sm:$0xff] %v229
    %253 = vst [vmem:[#allocation8 + $0x68] sm:$0xff] %v232
    %254 = vst [vmem:[#allocation8 + $0x70] sm:$0xff] %v235
    %255 = vst [vmem:[#allocation8 + $0x78] sm:$0xff] %v238
    // Predicated region
    $region26: #{tpu_custom_call.1} parent=1 // pred_check
      _
    $region27: #{tpu_custom_call.1} parent=1 // pred_check_branch
      %257 = sbr.rel (0) target = $region29
    $region28: #{tpu_custom_call.1} parent=1 // pred_region
      %259 = vsyncadd [#allocation4], 0
      %s260 = sshll.u32 [#allocation8], 4
      %s261 = int_to_ptr.vmem [resolvable:$true] %s260
      %s262 = sshll.u32 %s3, 4
      %s263 = int_to_ptr.hbm [resolvable:$true] %s262
      %268 = dma.vmem_to_hbm [thread:$0]  %s261, 2048, %s263, [#allocation4], 128, 128, 8
    $region29: #{tpu_custom_call.1} parent=1 // pred_fallthru
      _
    // Predicated region
    $region30: #{tpu_custom_call.1} parent=1 // pred_check
      _
    $region31: #{tpu_custom_call.1} parent=1 // pred_check_branch
      %270 = sbr.rel (0) target = $region33
    $region32: #{tpu_custom_call.1} parent=1 // pred_region
      %272 = dma.done [#allocation4], 2048
    $region33: #{tpu_custom_call.1} parent=1 // pred_fallthru
      _
    %273 = vsyncpa [#allocation3], 1
    %274 = vsyncpa [#allocation6], 1
    %275 = vsyncpa [#allocation4], 1

</llo_original>
